<compile_context>
chip_gen: v5e
topology: v5e:2x2
jax: 0.10.0
libtpu: 0.0.40
codegen_flags: <defaults>
</compile_context>

<pallas_src>
import functools

import jax
import jax.numpy as jnp
from jax.experimental import pallas as pl
from jax.experimental.pallas import tpu as pltpu

N_LANE = 128  # lane-dense fused-head / output width


def _cdiv(a, b):
    return -(-a // b)


def _round_up(x, m):
    return _cdiv(x, m) * m


def _choose_tile(batch, tb, num_cores):
    """Pick (TB, n_steps): batch tile (multiple of 8) and grid length.

    Fewest grid steps such that the tile stays under `tb` rows; when
    num_cores > 1 (v7x: 2 TensorCores) the step count is forced to a multiple
    of num_cores so the "parallel" axis actually shards across cores.
    """
    b8 = _round_up(max(batch, 1), 8)
    tb8 = max(8, _round_up(tb, 8))
    n_steps = _cdiv(b8, tb8)
    if num_cores > 1 and b8 >= 8 * num_cores:
        n_steps = _round_up(max(n_steps, num_cores), num_cores)
    tile = _round_up(_cdiv(b8, n_steps), 8)
    n_steps = _cdiv(b8, tile)
    return tile, n_steps


def agent_ac_kernel(x_ref, w1_ref, b1_ref, w2_ref, b2_ref, wh_ref, bh_ref,
                    out_ref, *, n_actions):
    cdt = w1_ref.dtype                      # MXU operand dtype (f32 or bf16)
    x = x_ref[...]                          # (TB, in_dim), already cdt

    # fc_1 + tanh, fc_2 + tanh: bf16/f32 operands, f32 accumulation, f32 VPU math.
    h = jnp.tanh(jnp.dot(x, w1_ref[...],
                         preferred_element_type=jnp.float32) + b1_ref[...])
    h = jnp.tanh(jnp.dot(h.astype(cdt), w2_ref[...],
                         preferred_element_type=jnp.float32) + b2_ref[...])

    # Fused actor/value heads: one (hid, 128) matmul -> (TB, 128) f32.
    heads = jnp.dot(h.astype(cdt), wh_ref[...],
                    preferred_element_type=jnp.float32) + bh_ref[...]

    # log_softmax over the first n_actions lanes only (f32 masking math).
    lane = jax.lax.broadcasted_iota(jnp.int32, heads.shape, 1)
    is_logit = lane < n_actions
    masked = jnp.where(is_logit, heads, jnp.float32(-1e30))
    m = jnp.max(masked, axis=-1, keepdims=True)
    z = masked - m
    # exp(-1e30 - m) underflows to exactly 0 in f32; no second mask needed.
    lse = jnp.log(jnp.sum(jnp.exp(z), axis=-1, keepdims=True))
    logp = z - lse

    # Lane-dense output: log-probs in lanes [0:n_actions], value in lane
    # n_actions (straight from `heads`), padding lanes carry `heads` garbage
    # that the host never reads.
    out_ref[...] = jnp.where(is_logit, logp, heads)


def prepare_params(p, compute_dtype=jnp.bfloat16):
    """PyTorch-layout params -> kernel layout (transposed, heads fused+padded).

    Matmul operands (w1/w2/wh and the activations feeding them) are stored in
    `compute_dtype` (bf16 by default: native MXU dtype, half the DMA bytes);
    biases stay f32 since they add into f32 accumulators.
    """
    hid = p["w2"].shape[0]
    n_actions = p["wa"].shape[0]
    assert n_actions < N_LANE, "fused actor/value head requires n_actions < 128"

    wh = jnp.zeros((hid, N_LANE), jnp.float32)
    wh = wh.at[:, :n_actions].set(p["wa"].T)              # actor columns
    wh = wh.at[:, n_actions].set(p["wv"][0])               # value column
    bh = jnp.zeros((1, N_LANE), jnp.float32)
    bh = bh.at[:, :n_actions].set(p["ba"])
    bh = bh.at[:, n_actions:n_actions + 1].set(p["bv"])

    return {
        "w1": p["w1"].T.astype(compute_dtype), "b1": p["b1"].astype(jnp.float32),
        "w2": p["w2"].T.astype(compute_dtype), "b2": p["b2"].astype(jnp.float32),
        "wh": wh.astype(compute_dtype), "bh": bh,
        "n_actions": n_actions,
        "compute_dtype": compute_dtype,
    }


def agent_ac_forward(x, kp, *, tb=2048, num_cores=1):
    """Run the fused AgentAC forward. Set num_cores=2 on v7x (2 TCs/chip)."""
    B, in_dim = x.shape
    hid = kp["w1"].shape[1]
    n_actions = kp["n_actions"]
    cdt = kp["compute_dtype"]
    x_bytes = jnp.dtype(cdt).itemsize

    # Cap the tile so the double-buffered x + out tiles stay well under the
    # most conservative scoped-VMEM default (v5e: 16 MiB).
    per_row = 2 * (in_dim * x_bytes + N_LANE * 4)
    tb = max(8, min(tb, (12 << 20) // per_row))

    TB, n_steps = _choose_tile(B, tb, num_cores)
    B_pad = TB * n_steps
    x = x.astype(cdt)                       # halves input DMA bytes when bf16
    if B_pad != B:
        # Only the rows needed to reach the tile boundary (usually < 8).
        x = jnp.pad(x, ((0, B_pad - B), (0, 0)))

    w_bytes = sum(int(kp[k].size) * kp[k].dtype.itemsize
                  for k in ("w1", "b1", "w2", "b2", "wh", "bh"))
    cost = pl.CostEstimate(
        flops=2 * B_pad * (in_dim * hid + hid * hid + hid * N_LANE),
        transcendentals=B_pad * (2 * hid + N_LANE + 1),   # tanh + exp + log
        bytes_accessed=B_pad * in_dim * x_bytes + w_bytes + B_pad * N_LANE * 4,
    )

    kernel = functools.partial(agent_ac_kernel, n_actions=n_actions)
    out = pl.pallas_call(
        kernel,
        out_shape=jax.ShapeDtypeStruct((B_pad, N_LANE), jnp.float32),
        grid=(n_steps,),
        in_specs=[
            pl.BlockSpec((TB, in_dim), lambda i: (i, 0)),      # x: tiled batch
            pl.BlockSpec((in_dim, hid), lambda i: (0, 0)),     # weights: resident
            pl.BlockSpec((1, hid), lambda i: (0, 0)),
            pl.BlockSpec((hid, hid), lambda i: (0, 0)),
            pl.BlockSpec((1, hid), lambda i: (0, 0)),
            pl.BlockSpec((hid, N_LANE), lambda i: (0, 0)),
            pl.BlockSpec((1, N_LANE), lambda i: (0, 0)),
        ],
        out_specs=pl.BlockSpec((TB, N_LANE), lambda i: (i, 0)),
        compiler_params=pltpu.CompilerParams(
            dimension_semantics=("parallel",)),
        cost_estimate=cost,
    )(x, kp["w1"], kp["b1"], kp["w2"], kp["b2"], kp["wh"], kp["bh"])

    logp = out[:B, :n_actions]
    v = out[:B, n_actions:n_actions + 1]
    return logp, v


def init_params(key, in_dim, hid, n_actions):
    ks = jax.random.split(key, 8)

    def uni(k, shape, fan_in):
        bound = 1.0 / jnp.sqrt(fan_in)
        return jax.random.uniform(k, shape, jnp.float32, -bound, bound)

    return {
        "w1": uni(ks[0], (hid, in_dim), in_dim),
        "b1": uni(ks[1], (1, hid), in_dim),
        "w2": uni(ks[2], (hid, hid), hid),
        "b2": uni(ks[3], (1, hid), hid),
        "wa": uni(ks[4], (n_actions, hid), hid),
        "ba": uni(ks[5], (1, n_actions), hid),
        "wv": uni(ks[6], (1, hid), hid),
        "bv": uni(ks[7], (1, 1), hid),
    }


def reference_forward(x, p):
    h = jnp.tanh(x @ p["w1"].T + p["b1"])
    h = jnp.tanh(h @ p["w2"].T + p["b2"])
    logits = h @ p["wa"].T + p["ba"]
    logp = jax.nn.log_softmax(logits, axis=-1)
    v = h @ p["wv"].T + p["bv"]
    return logp, v


if __name__ == "__main__":
    # Shapes consistent with the module: hid_size=32, message_dim=64 (fixed),
    # so final_obs feature dim = 32 + 2*64 = 160.  Batch = agents x envs = 64.
    batch = 64
    hid_size = 32
    message_dim = 64
    n_actions = 8
    in_dim = hid_size + 2 * message_dim

    key = jax.random.PRNGKey(0)
    kx, kp = jax.random.split(key)
    final_obs = jax.random.normal(kx, (batch, in_dim), jnp.float32)
    params = init_params(kp, in_dim, hid_size, n_actions)
    ref_logp, ref_v = reference_forward(final_obs, params)

    # f32 path: single grid step (TB = full batch, no padding), exact check.
    kp_f32 = prepare_params(params, compute_dtype=jnp.float32)
    logp, v = agent_ac_forward(final_obs, kp_f32)
    jax.block_until_ready((logp, v))
    assert logp.shape == (batch, n_actions) and v.shape == (batch, 1)
    assert jnp.allclose(logp, ref_logp, atol=1e-5, rtol=1e-5)
    assert jnp.allclose(v, ref_v, atol=1e-5, rtol=1e-5)

    # bf16 operands (f32 accumulation / softmax math), 2-way grid as on v7x.
    kp_bf16 = prepare_params(params, compute_dtype=jnp.bfloat16)
    logp_b, v_b = agent_ac_forward(final_obs, kp_bf16, num_cores=2)
    jax.block_until_ready((logp_b, v_b))
    assert logp_b.shape == (batch, n_actions) and v_b.shape == (batch, 1)
    assert jnp.allclose(logp_b, ref_logp, atol=0.15, rtol=0.05)
    assert jnp.allclose(v_b, ref_v, atol=0.15, rtol=0.05)

    print("KERNEL_OK")
</pallas_src>

<mosaic_0001>
module attributes {stable_mosaic.version = 11 : i64} {
  func.func @agent_ac_kernel(%arg0: i32, %arg1: memref<64x160xf32, #tpu.memory_space<vmem>>, %arg2: memref<160x32xf32, #tpu.memory_space<vmem>>, %arg3: memref<1x32xf32, #tpu.memory_space<vmem>>, %arg4: memref<32x32xf32, #tpu.memory_space<vmem>>, %arg5: memref<1x32xf32, #tpu.memory_space<vmem>>, %arg6: memref<32x128xf32, #tpu.memory_space<vmem>>, %arg7: memref<1x128xf32, #tpu.memory_space<vmem>>, %arg8: memref<64x128xf32, #tpu.memory_space<vmem>>) attributes {dimension_semantics = [#tpu.dimension_semantics<parallel>], iteration_bounds = array<i64: 1>, scalar_prefetch = 0 : i64, scratch_operands = 0 : i64, tpu.core_type = #tpu.core_type<tc>, window_params = [{transform_indices = @transform_0, window_bounds = array<i64: 64, 160>}, {pipeline_mode = #tpu.pipeline_mode<synchronous>, transform_indices = @transform_1, window_bounds = array<i64: 160, 32>}, {pipeline_mode = #tpu.pipeline_mode<synchronous>, transform_indices = @transform_2, window_bounds = array<i64: 1, 32>}, {pipeline_mode = #tpu.pipeline_mode<synchronous>, transform_indices = @transform_3, window_bounds = array<i64: 32, 32>}, {pipeline_mode = #tpu.pipeline_mode<synchronous>, transform_indices = @transform_4, window_bounds = array<i64: 1, 32>}, {pipeline_mode = #tpu.pipeline_mode<synchronous>, transform_indices = @transform_5, window_bounds = array<i64: 32, 128>}, {pipeline_mode = #tpu.pipeline_mode<synchronous>, transform_indices = @transform_6, window_bounds = array<i64: 1, 128>}, {transform_indices = @transform_7, window_bounds = array<i64: 64, 128>}]} {
    %c0 = arith.constant 0 : index
    %c0_0 = arith.constant 0 : index
    %0 = vector.load %arg1[%c0, %c0_0] : memref<64x160xf32, #tpu.memory_space<vmem>>, vector<64x160xf32>
    %c0_1 = arith.constant 0 : index
    %c0_2 = arith.constant 0 : index
    %1 = vector.load %arg2[%c0_1, %c0_2] : memref<160x32xf32, #tpu.memory_space<vmem>>, vector<160x32xf32>
    %cst = arith.constant dense<0.000000e+00> : vector<64x32xf32>
    %2 = tpu.matmul %0, %1, %cst {dimension_numbers = #tpu.dot_dimension_numbers<[1], [0], [0], [1], [0, 0, 1, 1], [], []>} : vector<64x160xf32>, vector<160x32xf32>, vector<64x32xf32> -> vector<64x32xf32>
    %c0_3 = arith.constant 0 : index
    %c0_4 = arith.constant 0 : index
    %3 = vector.load %arg3[%c0_3, %c0_4] : memref<1x32xf32, #tpu.memory_space<vmem>>, vector<1x32xf32>
    %4 = vector.broadcast %3 : vector<1x32xf32> to vector<64x32xf32>
    %5 = arith.addf %2, %4 : vector<64x32xf32>
    %6 = math.tanh %5 : vector<64x32xf32>
    %c0_5 = arith.constant 0 : index
    %c0_6 = arith.constant 0 : index
    %7 = vector.load %arg4[%c0_5, %c0_6] : memref<32x32xf32, #tpu.memory_space<vmem>>, vector<32x32xf32>
    %cst_7 = arith.constant dense<0.000000e+00> : vector<64x32xf32>
    %8 = tpu.matmul %6, %7, %cst_7 {dimension_numbers = #tpu.dot_dimension_numbers<[1], [0], [0], [1], [0, 0, 1, 1], [], []>} : vector<64x32xf32>, vector<32x32xf32>, vector<64x32xf32> -> vector<64x32xf32>
    %c0_8 = arith.constant 0 : index
    %c0_9 = arith.constant 0 : index
    %9 = vector.load %arg5[%c0_8, %c0_9] : memref<1x32xf32, #tpu.memory_space<vmem>>, vector<1x32xf32>
    %10 = vector.broadcast %9 : vector<1x32xf32> to vector<64x32xf32>
    %11 = arith.addf %8, %10 : vector<64x32xf32>
    %12 = math.tanh %11 : vector<64x32xf32>
    %c0_10 = arith.constant 0 : index
    %c0_11 = arith.constant 0 : index
    %13 = vector.load %arg6[%c0_10, %c0_11] : memref<32x128xf32, #tpu.memory_space<vmem>>, vector<32x128xf32>
    %cst_12 = arith.constant dense<0.000000e+00> : vector<64x128xf32>
    %14 = tpu.matmul %12, %13, %cst_12 {dimension_numbers = #tpu.dot_dimension_numbers<[1], [0], [0], [1], [0, 0, 1, 1], [], []>} : vector<64x32xf32>, vector<32x128xf32>, vector<64x128xf32> -> vector<64x128xf32>
    %c0_13 = arith.constant 0 : index
    %c0_14 = arith.constant 0 : index
    %15 = vector.load %arg7[%c0_13, %c0_14] : memref<1x128xf32, #tpu.memory_space<vmem>>, vector<1x128xf32>
    %16 = vector.broadcast %15 : vector<1x128xf32> to vector<64x128xf32>
    %17 = arith.addf %14, %16 : vector<64x128xf32>
    %18 = tpu.iota {dimensions = array<i32: 1>} : vector<64x128xi32>
    %c8_i32 = arith.constant 8 : i32
    %19 = vector.broadcast %c8_i32 : i32 to vector<64x128xi32>
    %20 = arith.cmpi slt, %18, %19 : vector<64x128xi32>
    %cst_15 = arith.constant -1.000000e+30 : f32
    %21 = vector.broadcast %cst_15 : f32 to vector<64x128xf32>
    %22 = arith.select %20, %17, %21 : vector<64x128xi1>, vector<64x128xf32>
    %cst_16 = arith.constant dense<0xFF800000> : vector<64xf32>
    %23 = vector.multi_reduction <maximumf>, %22, %cst_16 [1] : vector<64x128xf32> to vector<64xf32>
    %24 = vector.shape_cast %23 : vector<64xf32> to vector<64x1xf32>
    %25 = vector.broadcast %24 : vector<64x1xf32> to vector<64x128xf32>
    %26 = arith.subf %22, %25 : vector<64x128xf32>
    %27 = math.exp %26 : vector<64x128xf32>
    %cst_17 = arith.constant dense<0.000000e+00> : vector<64xf32>
    %28 = vector.multi_reduction <add>, %27, %cst_17 [1] : vector<64x128xf32> to vector<64xf32>
    %29 = vector.shape_cast %28 : vector<64xf32> to vector<64x1xf32>
    %30 = math.log %29 : vector<64x1xf32>
    %31 = vector.broadcast %30 : vector<64x1xf32> to vector<64x128xf32>
    %32 = arith.subf %26, %31 : vector<64x128xf32>
    %33 = arith.select %20, %32, %17 : vector<64x128xi1>, vector<64x128xf32>
    %c0_18 = arith.constant 0 : index
    %c0_19 = arith.constant 0 : index
    %34 = vector.load %arg8[%c0_18, %c0_19] : memref<64x128xf32, #tpu.memory_space<vmem>>, vector<64x128xf32>
    tpu.vector_store %arg8[%c0_18, %c0_19], %33 {strides = array<i32>} : memref<64x128xf32, #tpu.memory_space<vmem>>, vector<64x128xf32>,
    return
  }
  func.func @transform_0(%arg0: i32) -> (i32, i32) {
    %c0_i32 = arith.constant 0 : i32
    %c0_i32_0 = arith.constant 0 : i32
    return %arg0, %c0_i32 : i32, i32
  }
  func.func @transform_1(%arg0: i32) -> (i32, i32) {
    %c0_i32 = arith.constant 0 : i32
    %c0_i32_0 = arith.constant 0 : i32
    %c0_i32_1 = arith.constant 0 : i32
    return %c0_i32, %c0_i32_0 : i32, i32
  }
  func.func @transform_2(%arg0: i32) -> (i32, i32) {
    %c0_i32 = arith.constant 0 : i32
    %c0_i32_0 = arith.constant 0 : i32
    %c0_i32_1 = arith.constant 0 : i32
    return %c0_i32, %c0_i32_0 : i32, i32
  }
  func.func @transform_3(%arg0: i32) -> (i32, i32) {
    %c0_i32 = arith.constant 0 : i32
    %c0_i32_0 = arith.constant 0 : i32
    %c0_i32_1 = arith.constant 0 : i32
    return %c0_i32, %c0_i32_0 : i32, i32
  }
  func.func @transform_4(%arg0: i32) -> (i32, i32) {
    %c0_i32 = arith.constant 0 : i32
    %c0_i32_0 = arith.constant 0 : i32
    %c0_i32_1 = arith.constant 0 : i32
    return %c0_i32, %c0_i32_0 : i32, i32
  }
  func.func @transform_5(%arg0: i32) -> (i32, i32) {
    %c0_i32 = arith.constant 0 : i32
    %c0_i32_0 = arith.constant 0 : i32
    %c0_i32_1 = arith.constant 0 : i32
    return %c0_i32, %c0_i32_0 : i32, i32
  }
  func.func @transform_6(%arg0: i32) -> (i32, i32) {
    %c0_i32 = arith.constant 0 : i32
    %c0_i32_0 = arith.constant 0 : i32
    %c0_i32_1 = arith.constant 0 : i32
    return %c0_i32, %c0_i32_0 : i32, i32
  }
  func.func @transform_7(%arg0: i32) -> (i32, i32) {
    %c0_i32 = arith.constant 0 : i32
    %c0_i32_0 = arith.constant 0 : i32
    return %arg0, %c0_i32 : i32, i32
  }
}

</mosaic_0001>

<llo_original>
// kernel: tpu_custom_call.1
$region0: #{tpu_custom_call.1}
  #allocation0 [shape = 'u32[]', space=smem, size = 0x4, offset = 0x4, fixed_abs, tag = 'smem constant byte address 0x4 - core index']
  #allocation1 [shape = 'u32[72,128]{1,0:T(1,128)}', space=vmem, size = 0x9000, scoped, tag = 'internal scratch']
  %s0 = inlined_call_operand.vmem [shape: f32[64,160], index: 0, kind: input, shape index: {}]
  %s1 = inlined_call_operand.vmem [shape: f32[160,32], index: 1, kind: input, shape index: {}]
  %s2 = inlined_call_operand.vmem [shape: f32[1,32], index: 2, kind: input, shape index: {}]
  %s3 = inlined_call_operand.vmem [shape: f32[32,32], index: 3, kind: input, shape index: {}]
  %s4 = inlined_call_operand.vmem [shape: f32[1,32], index: 4, kind: input, shape index: {}]
  %s5 = inlined_call_operand.vmem [shape: f32[32,128], index: 5, kind: input, shape index: {}]
  %s6 = inlined_call_operand.vmem [shape: f32[1,128], index: 6, kind: input, shape index: {}]
  %s7 = inlined_call_operand.hbm [shape: f32[64,128], index: 7, kind: output, shape index: {}]
  %s8 = sld [smem:[#allocation0]]
  $region38: #{tpu_custom_call.1} parent=0
    _
  %s10 = ssub.s32 1, %s8
  %s11 = scalar_select 0, %s10, %s8
  $region1: #{tpu_custom_call.1} parent=0
    #allocation2 [shape = 'u8[32768]{0}', space=vmem, size = 0x8000, scoped, tag = 'output window, operand 0, single buffered']
    #allocation3 [shape = 's32[1]{0}', space=sflag, size = 0x4, scoped, tag = 'scoped memory for tpu_custom_call.1']
    %12 = vsyncpa [#allocation3], 0
    // Predicated region
    $region2: #{tpu_custom_call.1} parent=1 // pred_check
      _
    $region3: #{tpu_custom_call.1} parent=1 // pred_check_branch
      %14 = sbr.rel (0) target = $region5
    $region4: #{tpu_custom_call.1} parent=1 // pred_region
      _
    $region5: #{tpu_custom_call.1} parent=1 // pred_fallthru
      _
    // Predicated region
    $region6: #{tpu_custom_call.1} parent=1 // pred_check
      _
    $region7: #{tpu_custom_call.1} parent=1 // pred_check_branch
      %16 = sbr.rel (0) target = $region9
    $region8: #{tpu_custom_call.1} parent=1 // pred_region
      _
    $region9: #{tpu_custom_call.1} parent=1 // pred_fallthru
      _
    // Predicated region
    $region10: #{tpu_custom_call.1} parent=1 // pred_check
      _
    $region11: #{tpu_custom_call.1} parent=1 // pred_check_branch
      %18 = sbr.rel (0) target = $region13
    $region12: #{tpu_custom_call.1} parent=1 // pred_region
      _
    $region13: #{tpu_custom_call.1} parent=1 // pred_fallthru
      _
    // Predicated region
    $region14: #{tpu_custom_call.1} parent=1 // pred_check
      _
    $region15: #{tpu_custom_call.1} parent=1 // pred_check_branch
      %20 = sbr.rel (0) target = $region17
    $region16: #{tpu_custom_call.1} parent=1 // pred_region
      _
    $region17: #{tpu_custom_call.1} parent=1 // pred_fallthru
      _
    // Predicated region
    $region18: #{tpu_custom_call.1} parent=1 // pred_check
      _
    $region19: #{tpu_custom_call.1} parent=1 // pred_check_branch
      %22 = sbr.rel (0) target = $region21
    $region20: #{tpu_custom_call.1} parent=1 // pred_region
      _
    $region21: #{tpu_custom_call.1} parent=1 // pred_fallthru
      _
    // Predicated region
    $region22: #{tpu_custom_call.1} parent=1 // pred_check
      _
    $region23: #{tpu_custom_call.1} parent=1 // pred_check_branch
      %24 = sbr.rel (0) target = $region25
    $region24: #{tpu_custom_call.1} parent=1 // pred_region
      _
    $region25: #{tpu_custom_call.1} parent=1 // pred_fallthru
      _
    // Predicated region
    $region26: #{tpu_custom_call.1} parent=1 // pred_check
      _
    $region27: #{tpu_custom_call.1} parent=1 // pred_check_branch
      %26 = sbr.rel (0) target = $region29
    $region28: #{tpu_custom_call.1} parent=1 // pred_region
      _
    $region29: #{tpu_custom_call.1} parent=1 // pred_fallthru
      _
    %v27 = vld [vmem:[%s0] sm:$0xff]
    %v28 = vld [vmem:[%s0 + $0x8] sm:$0xff]
    %v29 = vld [vmem:[%s0 + $0x10] sm:$0xff]
    %v30 = vld [vmem:[%s0 + $0x18] sm:$0xff]
    %v31 = vld [vmem:[%s0 + $0x20] sm:$0xff]
    %v32 = vld [vmem:[%s0 + $0x28] sm:$0xff]
    %v33 = vld [vmem:[%s0 + $0x30] sm:$0xff]
    %v34 = vld [vmem:[%s0 + $0x38] sm:$0xff]
    %v35 = vld [vmem:[%s0 + $0x40] sm:$0xff]
    %v36 = vld [vmem:[%s0 + $0x48] sm:$0xff]
    %v37 = vld [vmem:[%s0 + $0x50] sm:$0xff]
    %v38 = vld [vmem:[%s0 + $0x58] sm:$0xff]
    %v39 = vld [vmem:[%s0 + $0x60] sm:$0xff]
    %v40 = vld [vmem:[%s0 + $0x68] sm:$0xff]
    %v41 = vld [vmem:[%s0 + $0x70] sm:$0xff]
    %v42 = vld [vmem:[%s0 + $0x78] sm:$0xff]
    %v43 = vld [vmem:[%s1] sm:$0xff]
    %v44 = vld [vmem:[%s1 + $0x8] sm:$0xff]
    %v45 = vld [vmem:[%s1 + $0x10] sm:$0xff]
    %v46 = vld [vmem:[%s1 + $0x18] sm:$0xff]
    %v47 = vld [vmem:[%s1 + $0x20] sm:$0xff]
    %v48 = vld [vmem:[%s1 + $0x28] sm:$0xff]
    %v49 = vld [vmem:[%s1 + $0x30] sm:$0xff]
    %v50 = vld [vmem:[%s1 + $0x38] sm:$0xff]
    %v51 = vld [vmem:[%s1 + $0x40] sm:$0xff]
    %v52 = vld [vmem:[%s1 + $0x48] sm:$0xff]
    %v53 = vld [vmem:[%s1 + $0x50] sm:$0xff]
    %v54 = vld [vmem:[%s1 + $0x58] sm:$0xff]
    %v55 = vld [vmem:[%s1 + $0x60] sm:$0xff]
    %v56 = vld [vmem:[%s1 + $0x68] sm:$0xff]
    %v57 = vld [vmem:[%s1 + $0x70] sm:$0xff]
    %v58 = vld [vmem:[%s1 + $0x78] sm:$0xff]
    %v59 = vld [vmem:[%s1 + $0x80] sm:$0xff]
    %v60 = vld [vmem:[%s1 + $0x88] sm:$0xff]
    %v61 = vld [vmem:[%s1 + $0x90] sm:$0xff]
    %v62 = vld [vmem:[%s1 + $0x98] sm:$0xff]
    %v63 = vld [vmem:[%s2] sm:$0x1]
    %v65 = vperm.slane %v63, 0
    %vm67 = vcmask 261120
    %v69 = vsel %vm67, %v28, 0
    %v72 = vsel %vm67, %v30, 0
    %v75 = vsel %vm67, %v32, 0
    %v78 = vsel %vm67, %v34, 0
    %v81 = vsel %vm67, %v36, 0
    %v84 = vsel %vm67, %v38, 0
    %v87 = vsel %vm67, %v40, 0
    %v90 = vsel %vm67, %v42, 0
    %92 = vmatpush.msra.mxu0 %v58
    %93 = vmatpush.msra.mxu0 %v57
    %94 = vmatpush.msra.mxu0 %v56
    %95 = vmatpush.msra.mxu0 %v55
    %96 = vmatpush.msra.mxu0 %v54
    %97 = vmatpush.msra.mxu0 %v53
    %98 = vmatpush.msra.mxu0 %v52
    %99 = vmatpush.msra.mxu0 %v51
    %100 = vmatpush.msra.mxu0 %v50
    %101 = vmatpush.msra.mxu0 %v49
    %102 = vmatpush.msra.mxu0 %v48
    %103 = vmatpush.msra.mxu0 %v47
    %104 = vmatpush.msra.mxu0 %v46
    %105 = vmatpush.msra.mxu0 %v45
    %106 = vmatpush.msra.mxu0 %v44
    %107 = vmatpush.msra.mxu0 %v43
    %108 = vmatmul.f32.gmra.mxu0 %v27
    %v109 = vpop.f32.mrf.mxu0
    %v110 = vadd.f32 %v65, %v109
    %111 = vmatmul.f32.gmra.mxu0 %v29
    %v112 = vpop.f32.mrf.mxu0
    %v113 = vadd.f32 %v65, %v112
    %114 = vmatmul.f32.gmra.mxu0 %v31
    %v115 = vpop.f32.mrf.mxu0
    %v116 = vadd.f32 %v65, %v115
    %117 = vmatmul.f32.gmra.mxu0 %v33
    %v118 = vpop.f32.mrf.mxu0
    %v119 = vadd.f32 %v65, %v118
    %120 = vmatmul.f32.gmra.mxu0 %v35
    %v121 = vpop.f32.mrf.mxu0
    %v122 = vadd.f32 %v65, %v121
    %123 = vmatmul.f32.gmra.mxu0 %v37
    %v124 = vpop.f32.mrf.mxu0
    %v125 = vadd.f32 %v65, %v124
    %126 = vmatmul.f32.gmra.mxu0 %v39
    %v127 = vpop.f32.mrf.mxu0
    %v128 = vadd.f32 %v65, %v127
    %129 = vmatmul.f32.gmra.mxu0 %v41
    %v130 = vpop.f32.mrf.mxu0
    %v131 = vadd.f32 %v65, %v130
    %132 = vdwg.mxu0
    %133 = vmatpush.msra.mxu0 0.0
    %134 = vmatpush.msra.mxu0 0.0
    %135 = vmatpush.msra.mxu0 0.0
    %136 = vmatpush.msra.mxu0 0.0
    %137 = vmatpush.msra.mxu0 0.0
    %138 = vmatpush.msra.mxu0 0.0
    %139 = vmatpush.msra.mxu0 0.0
    %140 = vmatpush.msra.mxu0 0.0
    %141 = vmatpush.msra.mxu0 0.0
    %142 = vmatpush.msra.mxu0 0.0
    %143 = vmatpush.msra.mxu0 0.0
    %144 = vmatpush.msra.mxu0 0.0
    %145 = vmatpush.msra.mxu0 %v62
    %146 = vmatpush.msra.mxu0 %v61
    %147 = vmatpush.msra.mxu0 %v60
    %148 = vmatpush.msra.mxu0 %v59
    %149 = vmatmul.f32.gmra.mxu0 %v69
    %v150 = vpop.f32.mrf.mxu0
    %v151 = vadd.f32 %v110, %v150
    %152 = vmatmul.f32.gmra.mxu0 %v72
    %v153 = vpop.f32.mrf.mxu0
    %v154 = vadd.f32 %v113, %v153
    %155 = vmatmul.f32.gmra.mxu0 %v75
    %v156 = vpop.f32.mrf.mxu0
    %v157 = vadd.f32 %v116, %v156
    %158 = vmatmul.f32.gmra.mxu0 %v78
    %v159 = vpop.f32.mrf.mxu0
    %v160 = vadd.f32 %v119, %v159
    %161 = vmatmul.f32.gmra.mxu0 %v81
    %v162 = vpop.f32.mrf.mxu0
    %v163 = vadd.f32 %v122, %v162
    %164 = vmatmul.f32.gmra.mxu0 %v84
    %v165 = vpop.f32.mrf.mxu0
    %v166 = vadd.f32 %v125, %v165
    %167 = vmatmul.f32.gmra.mxu0 %v87
    %v168 = vpop.f32.mrf.mxu0
    %v169 = vadd.f32 %v128, %v168
    %170 = vmatmul.f32.gmra.mxu0 %v90
    %v171 = vpop.f32.mrf.mxu0
    %v172 = vadd.f32 %v131, %v171
    %173 = vdwg.mxu0
    %v174 = vtanh.pop %v151
    %v175 = vtanh.pop %v154
    %v176 = vtanh.pop %v157
    %v177 = vtanh.pop %v160
    %v178 = vtanh.pop %v163
    %v179 = vtanh.pop %v166
    %v180 = vtanh.pop %v169
    %v181 = vtanh.pop %v172
    %v182 = vld [vmem:[%s3] sm:$0xff]
    %v183 = vld [vmem:[%s3 + $0x8] sm:$0xff]
    %v184 = vld [vmem:[%s3 + $0x10] sm:$0xff]
    %v185 = vld [vmem:[%s3 + $0x18] sm:$0xff]
    %v186 = vld [vmem:[%s4] sm:$0x1]
    %v188 = vperm.slane %v186, 0
    %v191 = vsel %vm67, %v174, 0
    %v194 = vsel %vm67, %v175, 0
    %v197 = vsel %vm67, %v176, 0
    %v200 = vsel %vm67, %v177, 0
    %v203 = vsel %vm67, %v178, 0
    %v206 = vsel %vm67, %v179, 0
    %v209 = vsel %vm67, %v180, 0
    %v212 = vsel %vm67, %v181, 0
    %214 = vmatpush.msra.mxu0 0.0
    %215 = vmatpush.msra.mxu0 0.0
    %216 = vmatpush.msra.mxu0 0.0
    %217 = vmatpush.msra.mxu0 0.0
    %218 = vmatpush.msra.mxu0 0.0
    %219 = vmatpush.msra.mxu0 0.0
    %220 = vmatpush.msra.mxu0 0.0
    %221 = vmatpush.msra.mxu0 0.0
    %222 = vmatpush.msra.mxu0 0.0
    %223 = vmatpush.msra.mxu0 0.0
    %224 = vmatpush.msra.mxu0 0.0
    %225 = vmatpush.msra.mxu0 0.0
    %226 = vmatpush.msra.mxu0 %v185
    %227 = vmatpush.msra.mxu0 %v184
    %228 = vmatpush.msra.mxu0 %v183
    %229 = vmatpush.msra.mxu0 %v182
    %230 = vmatmul.f32.gmra.mxu0 %v191
    %v231 = vpop.f32.mrf.mxu0
    %v232 = vadd.f32 %v188, %v231
    %233 = vmatmul.f32.gmra.mxu0 %v194
    %v234 = vpop.f32.mrf.mxu0
    %v235 = vadd.f32 %v188, %v234
    %236 = vmatmul.f32.gmra.mxu0 %v197
    %v237 = vpop.f32.mrf.mxu0
    %v238 = vadd.f32 %v188, %v237
    %239 = vmatmul.f32.gmra.mxu0 %v200
    %v240 = vpop.f32.mrf.mxu0
    %v241 = vadd.f32 %v188, %v240
    %242 = vmatmul.f32.gmra.mxu0 %v203
    %v243 = vpop.f32.mrf.mxu0
    %v244 = vadd.f32 %v188, %v243
    %245 = vmatmul.f32.gmra.mxu0 %v206
    %v246 = vpop.f32.mrf.mxu0
    %v247 = vadd.f32 %v188, %v246
    %248 = vmatmul.f32.gmra.mxu0 %v209
    %v249 = vpop.f32.mrf.mxu0
    %v250 = vadd.f32 %v188, %v249
    %251 = vmatmul.f32.gmra.mxu0 %v212
    %v252 = vpop.f32.mrf.mxu0
    %v253 = vadd.f32 %v188, %v252
    %254 = vdwg.mxu0
    %v255 = vtanh.pop %v232
    %v256 = vtanh.pop %v235
    %v257 = vtanh.pop %v238
    %v258 = vtanh.pop %v241
    %v259 = vtanh.pop %v244
    %v260 = vtanh.pop %v247
    %v261 = vtanh.pop %v250
    %v262 = vtanh.pop %v253
    %v263 = vld [vmem:[%s5] sm:$0xff]
    %v264 = vld [vmem:[%s5 + $0x8] sm:$0xff]
    %v265 = vld [vmem:[%s5 + $0x10] sm:$0xff]
    %v266 = vld [vmem:[%s5 + $0x18] sm:$0xff]
    %v267 = vld [vmem:[%s6] sm:$0x1]
    %v269 = vperm.slane %v267, 0
    %v272 = vsel %vm67, %v255, 0
    %v275 = vsel %vm67, %v256, 0
    %v278 = vsel %vm67, %v257, 0
    %v281 = vsel %vm67, %v258, 0
    %v284 = vsel %vm67, %v259, 0
    %v287 = vsel %vm67, %v260, 0
    %v290 = vsel %vm67, %v261, 0
    %v293 = vsel %vm67, %v262, 0
    %295 = vmatpush.msra.mxu0 0.0
    %296 = vmatpush.msra.mxu0 0.0
    %297 = vmatpush.msra.mxu0 0.0
    %298 = vmatpush.msra.mxu0 0.0
    %299 = vmatpush.msra.mxu0 0.0
    %300 = vmatpush.msra.mxu0 0.0
    %301 = vmatpush.msra.mxu0 0.0
    %302 = vmatpush.msra.mxu0 0.0
    %303 = vmatpush.msra.mxu0 0.0
    %304 = vmatpush.msra.mxu0 0.0
    %305 = vmatpush.msra.mxu0 0.0
    %306 = vmatpush.msra.mxu0 0.0
    %307 = vmatpush.msra.mxu0 %v266
    %308 = vmatpush.msra.mxu0 %v265
    %309 = vmatpush.msra.mxu0 %v264
    %310 = vmatpush.msra.mxu0 %v263
    %311 = vmatmul.f32.gmra.mxu0 %v272
    %v312 = vpop.f32.mrf.mxu0
    %v313 = vadd.f32 %v269, %v312
    %314 = vmatmul.f32.gmra.mxu0 %v275
    %v315 = vpop.f32.mrf.mxu0
    %v316 = vadd.f32 %v269, %v315
    %317 = vmatmul.f32.gmra.mxu0 %v278
    %v318 = vpop.f32.mrf.mxu0
    %v319 = vadd.f32 %v269, %v318
    %320 = vmatmul.f32.gmra.mxu0 %v281
    %v321 = vpop.f32.mrf.mxu0
    %v322 = vadd.f32 %v269, %v321
    %323 = vmatmul.f32.gmra.mxu0 %v284
    %v324 = vpop.f32.mrf.mxu0
    %v325 = vadd.f32 %v269, %v324
    %326 = vmatmul.f32.gmra.mxu0 %v287
    %v327 = vpop.f32.mrf.mxu0
    %v328 = vadd.f32 %v269, %v327
    %329 = vmatmul.f32.gmra.mxu0 %v290
    %v330 = vpop.f32.mrf.mxu0
    %v331 = vadd.f32 %v269, %v330
    %332 = vmatmul.f32.gmra.mxu0 %v293
    %v333 = vpop.f32.mrf.mxu0
    %v334 = vadd.f32 %v269, %v333
    %335 = vdwg.mxu0
    %v336 = vlaneseq
    %v337 = vand.u32 %v336, 127
    %vm338 = vcmp.lt.s32.totalorder %v337, 8
    %v339 = vsel %vm338, %v313, -1e+30
    %v340 = vsel %vm338, %v316, -1e+30
    %v341 = vsel %vm338, %v319, -1e+30
    %v342 = vsel %vm338, %v322, -1e+30
    %v343 = vsel %vm338, %v325, -1e+30
    %v344 = vsel %vm338, %v328, -1e+30
    %v345 = vsel %vm338, %v331, -1e+30
    %v346 = vsel %vm338, %v334, -1e+30
    %347 = vmax.xlane.f32.xlu0 %v339
    %v348 = vpop.xlane.xlu0 %347
    %349 = vmax.xlane.f32.xlu0 %v340
    %v350 = vpop.xlane.xlu0 %349
    %351 = vmax.xlane.f32.xlu0 %v341
    %v352 = vpop.xlane.xlu0 %351
    %353 = vmax.xlane.f32.xlu0 %v342
    %v354 = vpop.xlane.xlu0 %353
    %355 = vmax.xlane.f32.xlu0 %v343
    %v356 = vpop.xlane.xlu0 %355
    %357 = vmax.xlane.f32.xlu0 %v344
    %v358 = vpop.xlane.xlu0 %357
    %359 = vmax.xlane.f32.xlu0 %v345
    %v360 = vpop.xlane.xlu0 %359
    %361 = vmax.xlane.f32.xlu0 %v346
    %v362 = vpop.xlane.xlu0 %361
    %v363 = vsub.f32 %v339, %v348
    %v364 = vsub.f32 %v340, %v350
    %v365 = vsub.f32 %v341, %v352
    %v366 = vsub.f32 %v342, %v354
    %v367 = vsub.f32 %v343, %v356
    %v368 = vsub.f32 %v344, %v358
    %v369 = vsub.f32 %v345, %v360
    %v370 = vsub.f32 %v346, %v362
    %v371 = vmul.f32 %v363, 1.442695
    %v372 = vpow.pop %v371
    %v373 = vmul.f32 %v364, 1.442695
    %v374 = vpow.pop %v373
    %v375 = vmul.f32 %v365, 1.442695
    %v376 = vpow.pop %v375
    %v377 = vmul.f32 %v366, 1.442695
    %v378 = vpow.pop %v377
    %v379 = vmul.f32 %v367, 1.442695
    %v380 = vpow.pop %v379
    %v381 = vmul.f32 %v368, 1.442695
    %v382 = vpow.pop %v381
    %v383 = vmul.f32 %v369, 1.442695
    %v384 = vpow.pop %v383
    %v385 = vmul.f32 %v370, 1.442695
    %v386 = vpow.pop %v385
    %387 = vadd.xlane.f32.xlu0 %v372
    %v388 = vpop.xlane.xlu0 %387
    %389 = vadd.xlane.f32.xlu0 %v374
    %v390 = vpop.xlane.xlu0 %389
    %391 = vadd.xlane.f32.xlu0 %v376
    %v392 = vpop.xlane.xlu0 %391
    %393 = vadd.xlane.f32.xlu0 %v378
    %v394 = vpop.xlane.xlu0 %393
    %395 = vadd.xlane.f32.xlu0 %v380
    %v396 = vpop.xlane.xlu0 %395
    %397 = vadd.xlane.f32.xlu0 %v382
    %v398 = vpop.xlane.xlu0 %397
    %399 = vadd.xlane.f32.xlu0 %v384
    %v400 = vpop.xlane.xlu0 %399
    %401 = vadd.xlane.f32.xlu0 %v386
    %v402 = vpop.xlane.xlu0 %401
    %v403 = vlog2.pop %v388
    %v404 = vmul.f32 %v403, 0.6931472
    %v405 = vlog2.pop %v390
    %v406 = vmul.f32 %v405, 0.6931472
    %v407 = vlog2.pop %v392
    %v408 = vmul.f32 %v407, 0.6931472
    %v409 = vlog2.pop %v394
    %v410 = vmul.f32 %v409, 0.6931472
    %v411 = vlog2.pop %v396
    %v412 = vmul.f32 %v411, 0.6931472
    %v413 = vlog2.pop %v398
    %v414 = vmul.f32 %v413, 0.6931472
    %v415 = vlog2.pop %v400
    %v416 = vmul.f32 %v415, 0.6931472
    %v417 = vlog2.pop %v402
    %v418 = vmul.f32 %v417, 0.6931472
    %v419 = vsub.f32 %v363, %v404
    %v420 = vsub.f32 %v364, %v406
    %v421 = vsub.f32 %v365, %v408
    %v422 = vsub.f32 %v366, %v410
    %v423 = vsub.f32 %v367, %v412
    %v424 = vsub.f32 %v368, %v414
    %v425 = vsub.f32 %v369, %v416
    %v426 = vsub.f32 %v370, %v418
    %v427 = vsel %vm338, %v419, %v313
    %v428 = vsel %vm338, %v420, %v316
    %v429 = vsel %vm338, %v421, %v319
    %v430 = vsel %vm338, %v422, %v322
    %v431 = vsel %vm338, %v423, %v325
    %v432 = vsel %vm338, %v424, %v328
    %v433 = vsel %vm338, %v425, %v331
    %v434 = vsel %vm338, %v426, %v334
    %435 = vst [vmem:[#allocation2] sm:$0xff] %v427
    %436 = vst [vmem:[#allocation2 + $0x8] sm:$0xff] %v428
    %437 = vst [vmem:[#allocation2 + $0x10] sm:$0xff] %v429
    %438 = vst [vmem:[#allocation2 + $0x18] sm:$0xff] %v430
    %439 = vst [vmem:[#allocation2 + $0x20] sm:$0xff] %v431
    %440 = vst [vmem:[#allocation2 + $0x28] sm:$0xff] %v432
    %441 = vst [vmem:[#allocation2 + $0x30] sm:$0xff] %v433
    %442 = vst [vmem:[#allocation2 + $0x38] sm:$0xff] %v434
    // Predicated region
    $region30: #{tpu_custom_call.1} parent=1 // pred_check
      _
    $region31: #{tpu_custom_call.1} parent=1 // pred_check_branch
      %444 = sbr.rel (0) target = $region33
    $region32: #{tpu_custom_call.1} parent=1 // pred_region
      %446 = vsyncadd [#allocation3], 0
      %s447 = sshll.u32 [#allocation2], 4
      %s448 = int_to_ptr.vmem [resolvable:$true] %s447
      %s449 = sshll.u32 %s7, 4
      %s450 = int_to_ptr.hbm [resolvable:$true] %s449
      %455 = dma.vmem_to_hbm [thread:$0]  %s448, 1024, %s450, [#allocation3], 128, 128, 8
    $region33: #{tpu_custom_call.1} parent=1 // pred_fallthru
      _
    // Predicated region
    $region34: #{tpu_custom_call.1} parent=1 // pred_check
      _
    $region35: #{tpu_custom_call.1} parent=1 // pred_check_branch
      %457 = sbr.rel (0) target = $region37
    $region36: #{tpu_custom_call.1} parent=1 // pred_region
      %459 = dma.done [#allocation3], 1024
    $region37: #{tpu_custom_call.1} parent=1 // pred_fallthru
      _
    %460 = vsyncpa [#allocation3], 1

</llo_original>
